<compile_context>
chip_gen: v5e
topology: v5e:2x2
jax: 0.10.0
libtpu: 0.0.40
codegen_flags: <defaults>
</compile_context>

<pallas_src>
import functools

import jax
import jax.numpy as jnp
from jax.experimental import pallas as pl
from jax.experimental.pallas import tpu as pltpu

_ONE_MIB = 1 << 20
_ROW_CHUNK = 256  # max query rows whose f32 temporaries are live at once


def _scaled_masked_softmax_kernel(*refs, scale, rows_per_chunk, has_mask):
    if has_mask:
        inp_ref, mask_ref, out_ref = refs
    else:
        inp_ref, out_ref = refs
        mask_ref = None

    TH, TQ, SK = inp_ref.shape
    n_chunks = TQ // rows_per_chunk
    neg = jnp.float32(-10000.0)
    scale_f = None if scale is None else jnp.float32(scale)

    def process(q0, rows):
        # Upcast, scale, masked fill, stable softmax, downcast — fully fused.
        x = inp_ref[:, pl.ds(q0, rows), :].astype(jnp.float32)
        if scale_f is not None:
            x = x * scale_f
        if mask_ref is not None:
            m = mask_ref[pl.ds(q0, rows), :]          # (rows, SK); broadcasts over TH
            if not jnp.issubdtype(m.dtype, jnp.bool_):
                m = m != 0
            x = jnp.where(m, neg, x)
        x_max = jnp.max(x, axis=-1, keepdims=True)
        e = jnp.exp(x - x_max)
        denom = jnp.sum(e, axis=-1, keepdims=True)
        inv = pl.reciprocal(denom, approx=True)       # EUP slot, off the VALU
        out_ref[:, pl.ds(q0, rows), :] = (e * inv).astype(out_ref.dtype)

    if n_chunks == 1:
        process(0, TQ)
    else:
        @pl.loop(0, n_chunks)
        def _(c):
            q0 = pl.multiple_of(c * rows_per_chunk, rows_per_chunk)
            process(q0, rows_per_chunk)


def _rows_per_chunk(tq):
    if tq <= _ROW_CHUNK or tq % _ROW_CHUNK != 0:
        return tq
    return _ROW_CHUNK


def _choose_tiles(H, SQ, SK, in_itemsize, mask_itemsize):
    """Pick (TH, TQ) blocks that keep the double-buffered I/O + f32 temporaries
    inside a generation-aware VMEM budget."""
    try:
        vmem_cap = pltpu.get_tpu_info().vmem_capacity_bytes
    except Exception:
        vmem_cap = 64 * _ONE_MIB                    # v7x floor; conservative default
    if vmem_cap >= 96 * _ONE_MIB:                   # 128 MiB parts (v5e / v6e)
        budget = min(vmem_cap // 2, 56 * _ONE_MIB)
    else:                                           # 64 MiB parts (v7x)
        budget = min(max(vmem_cap // 2, 8 * _ONE_MIB), 26 * _ONE_MIB)

    def working_set(th, tq):
        io = th * tq * SK * 2 * in_itemsize + tq * SK * mask_itemsize  # in + out + mask
        f32_tmp = 4 * th * _rows_per_chunk(tq) * SK * 4                # in-flight f32 temps
        return 2 * io + f32_tmp                                        # 2x: double-buffered DMA

    # TQ must be a multiple of 8 or equal SQ (8,128 rule); cdiv grid handles remainders.
    tq_cands = [SQ] + [t for t in (1024, 512, 256, 128, 64, 32, 16, 8) if t < SQ]
    tq = next((t for t in tq_cands if working_set(1, t) <= budget), tq_cands[-1])

    # Fold as many heads as fit (largest divisor of H within budget).
    th = 1
    for cand in range(H, 1, -1):
        if H % cand == 0 and working_set(cand, tq) <= budget:
            th = cand
            break

    return th, tq, _rows_per_chunk(tq), working_set(th, tq), vmem_cap


def scaled_masked_softmax(inp, mask, scale=None):
    """Pallas TPU implementation of TorchScaledMaskedSoftmax.forward.

    inp:  (B, H, SQ, SK), any float dtype (output keeps this dtype)
    mask: (B, 1, SQ, SK) or None; nonzero/True => filled with -10000.0
    scale: optional python float (static)
    """
    B, H, SQ, SK = inp.shape
    if mask is not None:
        assert mask.shape == (B, 1, SQ, SK)

    in_isz = jnp.dtype(inp.dtype).itemsize
    mask_isz = jnp.dtype(mask.dtype).itemsize if mask is not None else 0
    TH, TQ, rows, ws, vmem_cap = _choose_tiles(H, SQ, SK, in_isz, mask_isz)
    n_q = pl.cdiv(SQ, TQ)
    n_h = H // TH
    # TODO(synk): if production SK < 128, fold query rows into the lane dim (or pad
    # SK with heavily-negative columns) to get lane-dense (unmasked) output stores.

    vmem_limit = int(min(max(32 * _ONE_MIB, ws + 16 * _ONE_MIB), (vmem_cap * 5) // 8))

    in_specs = [pl.BlockSpec((None, TH, TQ, SK), lambda b, q, h: (b, h, q, 0))]
    operands = [inp]
    if mask is not None:
        # Constant block index across h: the mask tile is DMA'd once per (b, q-tile).
        in_specs.append(pl.BlockSpec((None, None, TQ, SK), lambda b, q, h: (b, 0, q, 0)))
        operands.append(mask)

    kernel = functools.partial(
        _scaled_masked_softmax_kernel,
        scale=scale,
        rows_per_chunk=rows,
        has_mask=mask is not None,
    )

    return pl.pallas_call(
        kernel,
        out_shape=jax.ShapeDtypeStruct((B, H, SQ, SK), inp.dtype),
        grid_spec=pltpu.PrefetchScalarGridSpec(
            num_scalar_prefetch=0,
            grid=(B, n_q, n_h),
            in_specs=in_specs,
            out_specs=pl.BlockSpec((None, TH, TQ, SK), lambda b, q, h: (b, h, q, 0)),
        ),
        compiler_params=pltpu.CompilerParams(
            # h axis "arbitrary": megacore splits along B / q, preserving the
            # once-per-(b,q) mask DMA reuse on each core.
            dimension_semantics=("parallel", "parallel", "arbitrary"),
            vmem_limit_bytes=vmem_limit,
        ),
    )(*operands)


def _reference(inp, mask, scale=None):
    x = inp.astype(jnp.float32)
    if scale is not None:
        x = x * scale
    if mask is not None:
        x = jnp.where(mask != 0, -10000.0, x)
    return jax.nn.softmax(x, axis=-1).astype(inp.dtype)


if __name__ == "__main__":
    key = jax.random.PRNGKey(0)
    k_inp, k_mask = jax.random.split(key)

    B, H, SQ, SK = 2, 4, 16, 32
    inp = jax.random.normal(k_inp, (B, H, SQ, SK), dtype=jnp.float32).astype(
        jnp.bfloat16
    )
    mask = jax.random.uniform(k_mask, (B, 1, SQ, SK)) < 0.3  # bool, True => masked
    scale = 0.125

    # Main path: bool mask fed directly (no wrapper-side dtype conversion pass).
    out = jax.block_until_ready(scaled_masked_softmax(inp, mask, scale))
    ref = _reference(inp, mask, scale)
    assert out.dtype == inp.dtype and out.shape == inp.shape
    assert jnp.allclose(
        out.astype(jnp.float32), ref.astype(jnp.float32), atol=2e-2, rtol=2e-2
    ), "mismatch vs reference (bool mask, scaled)"

    # Integer mask + no scale path (exercises the `!= 0` branch).
    mask_i32 = mask.astype(jnp.int32)
    out2 = jax.block_until_ready(scaled_masked_softmax(inp, mask_i32, None))
    ref2 = _reference(inp, mask_i32, None)
    assert jnp.allclose(
        out2.astype(jnp.float32), ref2.astype(jnp.float32), atol=2e-2, rtol=2e-2
    ), "mismatch vs reference (int mask, no scale)"

    # mask=None path (plain scaled softmax).
    out3 = jax.block_until_ready(scaled_masked_softmax(inp, None, scale))
    ref3 = _reference(inp, None, scale)
    assert jnp.allclose(
        out3.astype(jnp.float32), ref3.astype(jnp.float32), atol=2e-2, rtol=2e-2
    ), "mismatch vs reference (no mask)"

    print("KERNEL_OK")
</pallas_src>

<mosaic_0001>
module attributes {stable_mosaic.version = 11 : i64} {
  func.func @_scaled_masked_softmax_kernel(%arg0: i32, %arg1: i32, %arg2: i32, %arg3: memref<1x4x16x32xbf16, #tpu.memory_space<vmem>>, %arg4: memref<1x1x16x32xi32, #tpu.memory_space<vmem>>, %arg5: memref<1x4x16x32xbf16, #tpu.memory_space<vmem>>) attributes {dimension_semantics = [#tpu.dimension_semantics<parallel>, #tpu.dimension_semantics<parallel>, #tpu.dimension_semantics<arbitrary>], iteration_bounds = array<i64: 2, 1, 1>, scalar_prefetch = 0 : i64, scratch_operands = 0 : i64, tpu.core_type = #tpu.core_type<tc>, window_params = [{transform_indices = @transform_0, window_bounds = array<i64: 1, 4, 16, 32>}, {transform_indices = @transform_1, window_bounds = array<i64: 1, 1, 16, 32>}, {transform_indices = @transform_2, window_bounds = array<i64: 1, 4, 16, 32>}]} {
    %c0 = arith.constant 0 : index
    %c0_0 = arith.constant 0 : index
    %c0_1 = arith.constant 0 : index
    %c0_2 = arith.constant 0 : index
    %0 = vector.load %arg3[%c0, %c0_0, %c0_1, %c0_2] : memref<1x4x16x32xbf16, #tpu.memory_space<vmem>>, vector<1x4x16x32xbf16>
    %1 = vector.shape_cast %0 : vector<1x4x16x32xbf16> to vector<4x16x32xbf16>
    %2 = arith.extf %1 : vector<4x16x32xbf16> to vector<4x16x32xf32>
    %cst = arith.constant 1.250000e-01 : f32
    %3 = vector.broadcast %cst : f32 to vector<4x16x32xf32>
    %4 = arith.mulf %2, %3 : vector<4x16x32xf32>
    %c0_3 = arith.constant 0 : index
    %c0_4 = arith.constant 0 : index
    %c0_5 = arith.constant 0 : index
    %c0_6 = arith.constant 0 : index
    %5 = vector.load %arg4[%c0_3, %c0_4, %c0_5, %c0_6] : memref<1x1x16x32xi32, #tpu.memory_space<vmem>>, vector<1x1x16x32xi32>
    %6 = vector.shape_cast %5 : vector<1x1x16x32xi32> to vector<16x32xi32>
    %cst_7 = arith.constant dense<0> : vector<16x32xi32>
    %7 = arith.cmpi ne, %6, %cst_7 : vector<16x32xi32>
    %cst_8 = arith.constant -1.000000e+04 : f32
    %8 = vector.shape_cast %7 : vector<16x32xi1> to vector<1x16x32xi1>
    %9 = vector.broadcast %8 : vector<1x16x32xi1> to vector<4x16x32xi1>
    %10 = vector.broadcast %cst_8 : f32 to vector<4x16x32xf32>
    %11 = arith.select %9, %10, %4 : vector<4x16x32xi1>, vector<4x16x32xf32>
    %cst_9 = arith.constant dense<0xFF800000> : vector<4x16xf32>
    %12 = vector.multi_reduction <maximumf>, %11, %cst_9 [2] : vector<4x16x32xf32> to vector<4x16xf32>
    %13 = vector.shape_cast %12 : vector<4x16xf32> to vector<4x16x1xf32>
    %14 = vector.broadcast %13 : vector<4x16x1xf32> to vector<4x16x32xf32>
    %15 = arith.subf %11, %14 : vector<4x16x32xf32>
    %16 = math.exp %15 : vector<4x16x32xf32>
    %cst_10 = arith.constant dense<0.000000e+00> : vector<4x16xf32>
    %17 = vector.multi_reduction <add>, %16, %cst_10 [2] : vector<4x16x32xf32> to vector<4x16xf32>
    %18 = vector.shape_cast %17 : vector<4x16xf32> to vector<4x16x1xf32>
    %19 = tpu.reciprocal %18 {approx = true} : vector<4x16x1xf32> -> vector<4x16x1xf32>
    %20 = vector.broadcast %19 : vector<4x16x1xf32> to vector<4x16x32xf32>
    %21 = arith.mulf %16, %20 : vector<4x16x32xf32>
    %22 = arith.truncf %21 : vector<4x16x32xf32> to vector<4x16x32xbf16>
    %c0_11 = arith.constant 0 : index
    %c0_12 = arith.constant 0 : index
    %c0_13 = arith.constant 0 : index
    %c0_14 = arith.constant 0 : index
    %23 = vector.load %arg5[%c0_11, %c0_12, %c0_13, %c0_14] : memref<1x4x16x32xbf16, #tpu.memory_space<vmem>>, vector<1x4x16x32xbf16>
    %24 = vector.shape_cast %23 : vector<1x4x16x32xbf16> to vector<4x16x32xbf16>
    %25 = vector.shape_cast %22 : vector<4x16x32xbf16> to vector<1x4x16x32xbf16>
    tpu.vector_store %arg5[%c0_11, %c0_12, %c0_13, %c0_14], %25 {strides = array<i32>} : memref<1x4x16x32xbf16, #tpu.memory_space<vmem>>, vector<1x4x16x32xbf16>,
    return
  }
  func.func @transform_0(%arg0: i32, %arg1: i32, %arg2: i32) -> (i32, i32, i32, i32) {
    %c0_i32 = arith.constant 0 : i32
    %c0_i32_0 = arith.constant 0 : i32
    return %arg0, %arg2, %arg1, %c0_i32 : i32, i32, i32, i32
  }
  func.func @transform_1(%arg0: i32, %arg1: i32, %arg2: i32) -> (i32, i32, i32, i32) {
    %c0_i32 = arith.constant 0 : i32
    %c0_i32_0 = arith.constant 0 : i32
    %c0_i32_1 = arith.constant 0 : i32
    return %arg0, %c0_i32, %arg1, %c0_i32_0 : i32, i32, i32, i32
  }
  func.func @transform_2(%arg0: i32, %arg1: i32, %arg2: i32) -> (i32, i32, i32, i32) {
    %c0_i32 = arith.constant 0 : i32
    %c0_i32_0 = arith.constant 0 : i32
    return %arg0, %arg2, %arg1, %c0_i32 : i32, i32, i32, i32
  }
}

</mosaic_0001>

<llo_original>
// kernel: tpu_custom_call.1
$region0: #{tpu_custom_call.1}
  #allocation0 [shape = 'u32[]', space=smem, size = 0x4, offset = 0x4, fixed_abs, tag = 'smem constant byte address 0x4 - core index']
  #allocation1 [shape = 'u32[72,128]{1,0:T(1,128)}', space=vmem, size = 0x9000, scoped, tag = 'internal scratch']
  %s0 = inlined_call_operand.hbm [shape: bf16[2,4,16,32], index: 0, kind: input, shape index: {}]
  %s1 = inlined_call_operand.vmem [shape: s32[2,1,16,32], index: 1, kind: input, shape index: {}]
  %s2 = inlined_call_operand.hbm [shape: bf16[2,4,16,32], index: 2, kind: output, shape index: {}]
  %s3 = sld [smem:[#allocation0]]
  $region45: #{tpu_custom_call.1} parent=0
    _
  %s5 = ssub.s32 1, %s3
  %s6 = scalar_select 0, %s5, %s3
  $region1: #{tpu_custom_call.1} parent=0
    #allocation2 [shape = 'u8[32768]{0}', space=vmem, size = 0x8000, scoped, tag = 'input window, operand 0']
    #allocation3 [shape = 's32[2]{0}', space=sflag, size = 0x8, scoped, tag = 'scoped memory for tpu_custom_call.1']
    #allocation4 [shape = 's32[2]{0}', space=sflag, size = 0x8, scoped, tag = 'scoped memory for tpu_custom_call.1']
    #allocation5 [shape = 'u8[32768]{0}', space=vmem, size = 0x8000, scoped, tag = 'output window, operand 0']
    %7 = vsyncpa [#allocation3], 0
    %s8 = scalar_lea.sflag [#allocation3], 1
    %9 = vsyncpa %s8, 0
    %10 = vsyncpa [#allocation4], 0
    %s11 = scalar_lea.sflag [#allocation4], 1
    %12 = vsyncpa %s11, 0
    loop: start=0, step=1, limit=4
    $region2: #{tpu_custom_call.1} parent=1 // loop_pre_header
      _
    $region3: #{tpu_custom_call.1} parent=1 // loop_header
      %s14 = sphi 0, %s18
      %p15 = scmp.ge.s32.totalorder %s14, 4
      %s21 = sphi 0, %s40
      %s22 = sphi 0, %s36
      %s23 = sphi 0, %s32
      %s24 = sphi 0, %s21
      %s25 = sphi 0, %s22
      %s26 = sphi 0, %s23
      %s27 = sphi 0, %s24
      %s28 = sphi 0, %s25
      %s29 = sphi 0, %s26
      %s47 = sphi 0, %s49
      %s50 = sphi 0, %s47
      %s51 = sphi 0, %s50
      %s67 = sphi 0, %s51
      %s75 = sphi 0, %s77
      %s78 = sphi 0, %s75
      %s79 = sphi 0, %s78
      %s95 = sphi 0, %s79
      %s105 = sphi 0, %s107
      %s108 = sphi 0, %s105
      %s109 = sphi 0, %s108
      %s125 = sphi 0, %s109
    $region4: #{tpu_custom_call.1} parent=1 // loop_header_branch
      %17 = sbr.rel (%p15) target = $region8
    $region5: #{tpu_custom_call.1} parent=1 // loop_body
      %s19 = ssub.s32 %s14, 1
      %s20 = ssub.s32 %s14, 2
      %s30 = sadd.s32 1, %s23
      %p31 = scmp.ge.s32.totalorder %s30, 1
      %s32 = scalar_select %p31, 0, %s30
      %s33 = sadd.s32 1, %s22
      %s34 = scalar_select %p31, %s33, %s22
      %p35 = scmp.ge.s32.totalorder %s34, 1
      %s36 = scalar_select %p35, 0, %s34
      %s37 = sadd.s32 1, %s21
      %s38 = scalar_select %p35, %s37, %s21
      %p39 = scmp.ge.s32.totalorder %s38, 2
      %s40 = scalar_select %p39, 0, %s38
      %s41 = ssub.s32 %s21, %s40
      %s42 = ssub.s32 %s23, %s32
      %s43 = sor.u32 %s41, %s42
      %s44 = ssub.s32 %s22, %s36
      %s45 = sor.u32 %s43, %s44
      %p46 = scmp.eq.s32.totalorder %s45, 0
      %s48 = sadd.s32 %s47, 1
      %s49 = scalar_select %p46, %s47, %s48
      %p52 = pneg %p46
      %p53 = scmp.eq.s32.totalorder %s14, 1
      %p54 = por %p52, %p53
      %p55 = scmp.ne.s32.totalorder %s47, %s50
      %p56 = scmp.eq.s32.totalorder %s14, 0
      %p57 = por %p55, %p56
      %p58 = scmp.ne.s32.totalorder %s47, %s50
      %p59 = scmp.eq.s32.totalorder %s19, 1
      %p60 = por %p58, %p59
      %p61 = scmp.ne.s32.totalorder %s50, %s51
      %p62 = scmp.eq.s32.totalorder %s19, 0
      %p63 = por %p61, %p62
      %p64 = scmp.ne.s32.totalorder %s50, %s51
      %p65 = scmp.eq.s32.totalorder %s20, 1
      %p66 = por %p64, %p65
      %p68 = scmp.ne.s32.totalorder %s51, %s67
      %p69 = scmp.eq.s32.totalorder %s20, 0
      %p70 = por %p68, %p69
      %s71 = ssub.s32 %s21, %s40
      %s72 = ssub.s32 %s22, %s36
      %s73 = sor.u32 %s71, %s72
      %p74 = scmp.eq.s32.totalorder %s73, 0
      %s76 = sadd.s32 %s75, 1
      %s77 = scalar_select %p74, %s75, %s76
      %p80 = pneg %p74
      %p81 = scmp.eq.s32.totalorder %s14, 1
      %p82 = por %p80, %p81
      %p83 = scmp.ne.s32.totalorder %s75, %s78
      %p84 = scmp.eq.s32.totalorder %s14, 0
      %p85 = por %p83, %p84
      %p86 = scmp.ne.s32.totalorder %s75, %s78
      %p87 = scmp.eq.s32.totalorder %s19, 1
      %p88 = por %p86, %p87
      %p89 = scmp.ne.s32.totalorder %s78, %s79
      %p90 = scmp.eq.s32.totalorder %s19, 0
      %p91 = por %p89, %p90
      %p92 = scmp.ne.s32.totalorder %s78, %s79
      %p93 = scmp.eq.s32.totalorder %s20, 1
      %p94 = por %p92, %p93
      %p96 = scmp.ne.s32.totalorder %s79, %s95
      %p97 = scmp.eq.s32.totalorder %s20, 0
      %p98 = por %p96, %p97
      %s99 = ssub.s32 %s21, %s40
      %s100 = ssub.s32 %s23, %s32
      %s101 = sor.u32 %s99, %s100
      %s102 = ssub.s32 %s22, %s36
      %s103 = sor.u32 %s101, %s102
      %p104 = scmp.eq.s32.totalorder %s103, 0
      %s106 = sadd.s32 %s105, 1
      %s107 = scalar_select %p104, %s105, %s106
      %p110 = pneg %p104
      %p111 = scmp.eq.s32.totalorder %s14, 1
      %p112 = por %p110, %p111
      %p113 = scmp.ne.s32.totalorder %s105, %s108
      %p114 = scmp.eq.s32.totalorder %s14, 0
      %p115 = por %p113, %p114
      %p116 = scmp.ne.s32.totalorder %s105, %s108
      %p117 = scmp.eq.s32.totalorder %s19, 1
      %p118 = por %p116, %p117
      %p119 = scmp.ne.s32.totalorder %s108, %s109
      %p120 = scmp.eq.s32.totalorder %s19, 0
      %p121 = por %p119, %p120
      %p122 = scmp.ne.s32.totalorder %s108, %s109
      %p123 = scmp.eq.s32.totalorder %s20, 1
      %p124 = por %p122, %p123
      %p126 = scmp.ne.s32.totalorder %s109, %s125
      %p127 = scmp.eq.s32.totalorder %s20, 0
      %p128 = por %p126, %p127
      %p129 = scmp.le.s32.totalorder 1, %s14
      %p130 = scmp.lt.s32.totalorder %s14, 3
      %p131 = pnand %p129, %p130
      %p132 = pneg %p131
      // Predicated region
      $region9: #{tpu_custom_call.1} parent=5 // pred_check
        _
      $region10: #{tpu_custom_call.1} parent=5 // pred_check_branch
        %134 = sbr.rel (%p131) target = $region12
      $region11: #{tpu_custom_call.1} parent=5 // pred_region
        %s135 = ssub.s32 %s14, 1
      $region12: #{tpu_custom_call.1} parent=5 // pred_fallthru
        _
      %p136 = scmp.lt.s32.totalorder %s14, 2
      // Predicated region
      $region13: #{tpu_custom_call.1} parent=5 // pred_check
        %p137 = pneg %p136
      $region14: #{tpu_custom_call.1} parent=5 // pred_check_branch
        %139 = sbr.rel (%p137) target = $region16
      $region15: #{tpu_custom_call.1} parent=5 // pred_region
        // Predicated region
        $region17: #{tpu_custom_call.1} parent=15 // pred_check
          %p140 = pneg %p57
        $region18: #{tpu_custom_call.1} parent=15 // pred_check_branch
          %142 = sbr.rel (%p140) target = $region20
        $region19: #{tpu_custom_call.1} parent=15 // pred_region
          %s143 = sand.u32 %s47, 1
          %s144 = scalar_lea.sflag [#allocation3], %s143
          %s145 = sand.u32 %s47, 1
          %s146 = smul.addr %s145, 32
          %s147 = scalar_lea.vmem [#allocation2], %s146
          %s148 = smul.u32 4, %s23
          %s149 = smul.u32 2, %s22
          %151 = vsyncadd %s144, 0
          %s152 = smul.addr %s148, 2
          %s153 = sadd.s32 %s149, %s152
          %s154 = smul.addr %s21, 8
          %s155 = sadd.s32 %s153, %s154
          %s156 = smul.addr %s155, 4
          %s157 = scalar_lea.hbm %s0, %s156
          %s158 = sshll.u32 %s157, 4
          %s159 = int_to_ptr.hbm [resolvable:$true] %s158
          %s160 = sshll.u32 %s147, 4
          %s161 = int_to_ptr.vmem [resolvable:$true] %s160
          %166 = dma.hbm_to_vmem [thread:$0]  %s159, 512, %s161, %s144, 64, 64, 4
        $region20: #{tpu_custom_call.1} parent=15 // pred_fallthru
          _
        // Predicated region
        $region21: #{tpu_custom_call.1} parent=15 // pred_check
          %p167 = pneg %p85
        $region22: #{tpu_custom_call.1} parent=15 // pred_check_branch
          %169 = sbr.rel (%p167) target = $region24
        $region23: #{tpu_custom_call.1} parent=15 // pred_region
          %s170 = smul.u32 2, %s22
          %p171 = scmp.lt.s32.totalorder %s21, 1
          %s172 = scalar_select %p171, %s21, 1
          %p173 = scmp.lt.s32.totalorder %s170, 1
          %s174 = scalar_select %p173, %s170, 1
          %s175 = smul.addr %s172, 2
          %s176 = sadd.s32 %s174, %s175
          %s177 = smul.addr %s176, 8
          %s178 = scalar_lea.vmem %s1, %s177
          %s179 = smul.u32 2, %s22
        $region24: #{tpu_custom_call.1} parent=15 // pred_fallthru
          _
      $region16: #{tpu_custom_call.1} parent=5 // pred_fallthru
        _
      %p180 = scmp.le.s32.totalorder 1, %s14
      %p181 = scmp.lt.s32.totalorder %s14, 3
      %p182 = pnand %p180, %p181
      %p183 = pneg %p182
      // Predicated region
      $region25: #{tpu_custom_call.1} parent=5 // pred_check
        _
      $region26: #{tpu_custom_call.1} parent=5 // pred_check_branch
        %185 = sbr.rel (%p182) target = $region28
      $region27: #{tpu_custom_call.1} parent=5 // pred_region
        %s186 = ssub.s32 %s14, 1
        %s187 = sand.u32 %s50, 1
        %s188 = scalar_lea.sflag [#allocation3], %s187
        %s189 = sand.u32 %s50, 1
        %s190 = smul.addr %s189, 32
        %s191 = scalar_lea.vmem [#allocation2], %s190
        // Predicated region
        $region29: #{tpu_custom_call.1} parent=27 // pred_check
          %p192 = pneg %p63
        $region30: #{tpu_custom_call.1} parent=27 // pred_check_branch
          %194 = sbr.rel (%p192) target = $region32
        $region31: #{tpu_custom_call.1} parent=27 // pred_region
          %196 = dma.done %s188, 512
        $region32: #{tpu_custom_call.1} parent=27 // pred_fallthru
          _
        %s197 = sand.u32 %s50, 1
        %s198 = scalar_lea.sflag [#allocation3], %s197
        %s199 = sand.u32 %s50, 1
        %s200 = smul.addr %s199, 32
        %s201 = scalar_lea.vmem [#allocation2], %s200
        %p202 = pneg %p63
        %p203 = pneg %p60
        %s204 = smul.u32 2, %s25
        %p205 = scmp.lt.s32.totalorder %s24, 1
        %s206 = scalar_select %p205, %s24, 1
        %p207 = scmp.lt.s32.totalorder %s204, 1
        %s208 = scalar_select %p207, %s204, 1
        %s209 = smul.addr %s206, 2
        %s210 = sadd.s32 %s208, %s209
        %s211 = smul.addr %s210, 8
        %s212 = scalar_lea.vmem %s1, %s211
        %p213 = pneg %p91
        %p214 = pneg %p88
        %p215 = pneg %p121
        %p216 = pneg %p118
        %s217 = sand.u32 %s108, 1
        %s218 = scalar_lea.sflag [#allocation4], %s217
        %s219 = sand.u32 %s108, 1
        %s220 = smul.addr %s219, 32
        %s221 = scalar_lea.vmem [#allocation5], %s220
        %s222 = smul.u32 4, %s26
        %s223 = smul.u32 2, %s25
        %s224 = smul.u32 2, %s25
        %p225 = scmp.lt.s32.totalorder %s24, 1
        %s226 = scalar_select %p225, %s24, 1
        %p227 = scmp.lt.s32.totalorder %s224, 1
        %s228 = scalar_select %p227, %s224, 1
        %s229 = smul.addr %s226, 2
        %s230 = sadd.s32 %s228, %s229
        %s231 = smul.addr %s230, 8
        %s232 = scalar_lea.vmem %s1, %s231
        %s233 = smul.u32 2, %s25
        %s234 = smul.u32 4, %s26
        %s235 = smul.u32 2, %s25
        %v236 = vld [vmem:[%s191] sm:$0xf]
        %v237 = vld [vmem:[%s191 + $0x4] sm:$0xf]
        %v238 = vld [vmem:[%s191 + $0x8] sm:$0xf]
        %v239 = vld [vmem:[%s191 + $0xc] sm:$0xf]
        %v240 = vld [vmem:[%s191 + $0x10] sm:$0xf]
        %v241 = vld [vmem:[%s191 + $0x14] sm:$0xf]
        %v242 = vld [vmem:[%s191 + $0x18] sm:$0xf]
        %v243 = vld [vmem:[%s191 + $0x1c] sm:$0xf]
        %v244 = vunpack.c.l.bf16 %v236
        %v245 = vunpack.c.l.bf16 %v237
        %v246 = vunpack.c.l.bf16 %v238
        %v247 = vunpack.c.l.bf16 %v239
        %v248 = vunpack.c.l.bf16 %v240
        %v249 = vunpack.c.l.bf16 %v241
        %v250 = vunpack.c.l.bf16 %v242
        %v251 = vunpack.c.l.bf16 %v243
        %v252 = vmul.f32 %v244, 0.125
        %v253 = vmul.f32 %v245, 0.125
        %v254 = vmul.f32 %v246, 0.125
        %v255 = vmul.f32 %v247, 0.125
        %v256 = vmul.f32 %v248, 0.125
        %v257 = vmul.f32 %v249, 0.125
        %v258 = vmul.f32 %v250, 0.125
        %v259 = vmul.f32 %v251, 0.125
        %v260 = vld [vmem:[%s232] sm:$0xff]
        %v261 = vld [vmem:[%s232 + $0x8] sm:$0xff]
        %vm262 = vcmp.ne.s32.totalorder %v260, 0
        %vm263 = vcmp.ne.s32.totalorder %v261, 0
        %v264 = vsel %vm262, 1, 0
        %v265 = vsel %vm263, 1, 0
        %vm266 = vcmp.eq.s32.totalorder %v264, 1
        %vm267 = vcmp.eq.s32.totalorder %v265, 1
        %v268 = vsel %vm266, -10000.0, %v252
        %v269 = vsel %vm267, -10000.0, %v253
        %v270 = vsel %vm266, -10000.0, %v254
        %v271 = vsel %vm267, -10000.0, %v255
        %v272 = vsel %vm266, -10000.0, %v256
        %v273 = vsel %vm267, -10000.0, %v257
        %v274 = vsel %vm266, -10000.0, %v258
        %v275 = vsel %vm267, -10000.0, %v259
        %vm276 = vcmask 261120
        %v277 = vsel %vm276, %v268, -inf
        %278 = vmax.xlane.f32.xlu0 %v277
        %v279 = vpop.xlane.xlu0 %278
        %v280 = vsel %vm276, %v269, -inf
        %281 = vmax.xlane.f32.xlu0 %v280
        %v282 = vpop.xlane.xlu0 %281
        %v283 = vsel %vm276, %v270, -inf
        %284 = vmax.xlane.f32.xlu0 %v283
        %v285 = vpop.xlane.xlu0 %284
        %v286 = vsel %vm276, %v271, -inf
        %287 = vmax.xlane.f32.xlu0 %v286
        %v288 = vpop.xlane.xlu0 %287
        %v289 = vsel %vm276, %v272, -inf
        %290 = vmax.xlane.f32.xlu0 %v289
        %v291 = vpop.xlane.xlu0 %290
        %v292 = vsel %vm276, %v273, -inf
        %293 = vmax.xlane.f32.xlu0 %v292
        %v294 = vpop.xlane.xlu0 %293
        %v295 = vsel %vm276, %v274, -inf
        %296 = vmax.xlane.f32.xlu0 %v295
        %v297 = vpop.xlane.xlu0 %296
        %v298 = vsel %vm276, %v275, -inf
        %299 = vmax.xlane.f32.xlu0 %v298
        %v300 = vpop.xlane.xlu0 %299
        %v301 = vsub.f32 %v268, %v279
        %v302 = vsub.f32 %v269, %v282
        %v303 = vsub.f32 %v270, %v285
        %v304 = vsub.f32 %v271, %v288
        %v305 = vsub.f32 %v272, %v291
        %v306 = vsub.f32 %v273, %v294
        %v307 = vsub.f32 %v274, %v297
        %v308 = vsub.f32 %v275, %v300
        %v309 = vmul.f32 %v301, 1.442695
        %v310 = vpow.pop %v309
        %v311 = vmul.f32 %v302, 1.442695
        %v312 = vpow.pop %v311
        %v313 = vmul.f32 %v303, 1.442695
        %v314 = vpow.pop %v313
        %v315 = vmul.f32 %v304, 1.442695
        %v316 = vpow.pop %v315
        %v317 = vmul.f32 %v305, 1.442695
        %v318 = vpow.pop %v317
        %v319 = vmul.f32 %v306, 1.442695
        %v320 = vpow.pop %v319
        %v321 = vmul.f32 %v307, 1.442695
        %v322 = vpow.pop %v321
        %v323 = vmul.f32 %v308, 1.442695
        %v324 = vpow.pop %v323
        %v325 = vsel %vm276, %v310, 0.0
        %326 = vadd.xlane.f32.xlu0 %v325
        %v327 = vpop.xlane.xlu0 %326
        %v328 = vsel %vm276, %v312, 0.0
        %329 = vadd.xlane.f32.xlu0 %v328
        %v330 = vpop.xlane.xlu0 %329
        %v331 = vsel %vm276, %v314, 0.0
        %332 = vadd.xlane.f32.xlu0 %v331
        %v333 = vpop.xlane.xlu0 %332
        %v334 = vsel %vm276, %v316, 0.0
        %335 = vadd.xlane.f32.xlu0 %v334
        %v336 = vpop.xlane.xlu0 %335
        %v337 = vsel %vm276, %v318, 0.0
        %338 = vadd.xlane.f32.xlu0 %v337
        %v339 = vpop.xlane.xlu0 %338
        %v340 = vsel %vm276, %v320, 0.0
        %341 = vadd.xlane.f32.xlu0 %v340
        %v342 = vpop.xlane.xlu0 %341
        %v343 = vsel %vm276, %v322, 0.0
        %344 = vadd.xlane.f32.xlu0 %v343
        %v345 = vpop.xlane.xlu0 %344
        %v346 = vsel %vm276, %v324, 0.0
        %347 = vadd.xlane.f32.xlu0 %v346
        %v348 = vpop.xlane.xlu0 %347
        %v349 = vrcp.pop %v327
        %v350 = vrcp.pop %v330
        %v351 = vrcp.pop %v333
        %v352 = vrcp.pop %v336
        %v353 = vrcp.pop %v339
        %v354 = vrcp.pop %v342
        %v355 = vrcp.pop %v345
        %v356 = vrcp.pop %v348
        %v357 = vmul.f32 %v310, %v349
        %v358 = vmul.f32 %v312, %v350
        %v359 = vmul.f32 %v314, %v351
        %v360 = vmul.f32 %v316, %v352
        %v361 = vmul.f32 %v318, %v353
        %v362 = vmul.f32 %v320, %v354
        %v363 = vmul.f32 %v322, %v355
        %v364 = vmul.f32 %v324, %v356
        %v365 = vpack.c.bf16 %v357, %v357
        %v366 = vpack.c.bf16 %v358, %v358
        %v367 = vpack.c.bf16 %v359, %v359
        %v368 = vpack.c.bf16 %v360, %v360
        %v369 = vpack.c.bf16 %v361, %v361
        %v370 = vpack.c.bf16 %v362, %v362
        %v371 = vpack.c.bf16 %v363, %v363
        %v372 = vpack.c.bf16 %v364, %v364
        %vm373 = vcmask 257024
        %374 = vst.msk [vmem:[%s221] sm:$0xf] %vm373, %v365
        %375 = vst.msk [vmem:[%s221 + $0x4] sm:$0xf] %vm373, %v366
        %376 = vst.msk [vmem:[%s221 + $0x8] sm:$0xf] %vm373, %v367
        %377 = vst.msk [vmem:[%s221 + $0xc] sm:$0xf] %vm373, %v368
        %378 = vst.msk [vmem:[%s221 + $0x10] sm:$0xf] %vm373, %v369
        %379 = vst.msk [vmem:[%s221 + $0x14] sm:$0xf] %vm373, %v370
        %380 = vst.msk [vmem:[%s221 + $0x18] sm:$0xf] %vm373, %v371
        %381 = vst.msk [vmem:[%s221 + $0x1c] sm:$0xf] %vm373, %v372
        %s382 = sand.u32 %s108, 1
        %s383 = scalar_lea.sflag [#allocation4], %s382
        %s384 = sand.u32 %s108, 1
        %s385 = smul.addr %s384, 32
        %s386 = scalar_lea.vmem [#allocation5], %s385
        // Predicated region
        $region33: #{tpu_custom_call.1} parent=27 // pred_check
          %p387 = pneg %p118
        $region34: #{tpu_custom_call.1} parent=27 // pred_check_branch
          %389 = sbr.rel (%p387) target = $region36
        $region35: #{tpu_custom_call.1} parent=27 // pred_region
          %s390 = smul.u32 4, %s26
          %s391 = smul.u32 2, %s25
          %393 = vsyncadd %s383, 0
          %s394 = smul.addr %s390, 2
          %s395 = sadd.s32 %s391, %s394
          %s396 = smul.addr %s24, 8
          %s397 = sadd.s32 %s395, %s396
          %s398 = smul.addr %s397, 4
          %s399 = scalar_lea.hbm %s2, %s398
          %s400 = sshll.u32 %s386, 4
          %s401 = int_to_ptr.vmem [resolvable:$true] %s400
          %s402 = sshll.u32 %s399, 4
          %s403 = int_to_ptr.hbm [resolvable:$true] %s402
          %408 = dma.vmem_to_hbm [thread:$0]  %s401, 512, %s403, %s383, 64, 64, 4
        $region36: #{tpu_custom_call.1} parent=27 // pred_fallthru
          _
      $region28: #{tpu_custom_call.1} parent=5 // pred_fallthru
        _
      %p409 = scmp.le.s32.totalorder 2, %s14
      // Predicated region
      $region37: #{tpu_custom_call.1} parent=5 // pred_check
        %p410 = pneg %p409
      $region38: #{tpu_custom_call.1} parent=5 // pred_check_branch
        %412 = sbr.rel (%p410) target = $region40
      $region39: #{tpu_custom_call.1} parent=5 // pred_region
        %s413 = ssub.s32 %s14, 2
        // Predicated region
        $region41: #{tpu_custom_call.1} parent=39 // pred_check
          %p414 = pneg %p124
        $region42: #{tpu_custom_call.1} parent=39 // pred_check_branch
          %416 = sbr.rel (%p414) target = $region44
        $region43: #{tpu_custom_call.1} parent=39 // pred_region
          %s417 = sand.u32 %s109, 1
          %s418 = scalar_lea.sflag [#allocation4], %s417
          %s419 = sand.u32 %s109, 1
          %s420 = smul.addr %s419, 32
          %s421 = scalar_lea.vmem [#allocation5], %s420
          %423 = dma.done %s418, 512
        $region44: #{tpu_custom_call.1} parent=39 // pred_fallthru
          _
      $region40: #{tpu_custom_call.1} parent=5 // pred_fallthru
        _
    $region6: #{tpu_custom_call.1} parent=1 // loop_footer
      %s18 = sadd.s32 1, %s14
    $region7: #{tpu_custom_call.1} parent=1 // loop_footer_branch
      %13 = sbr.rel target = $region3
    $region8: #{tpu_custom_call.1} parent=1 // loop_exit
      _
    %424 = vsyncpa [#allocation3], 1
    %s425 = scalar_lea.sflag [#allocation3], 1
    %426 = vsyncpa %s425, 1
    %427 = vsyncpa [#allocation4], 1
    %s428 = scalar_lea.sflag [#allocation4], 1
    %429 = vsyncpa %s428, 1

</llo_original>
